<compile_context>
chip_gen: v5e
topology: v5e:2x2
jax: 0.10.0
libtpu: 0.0.40
codegen_flags: <defaults>
</compile_context>

<pallas_src>
import functools

import jax
import jax.numpy as jnp
from jax.experimental import pallas as pl
from jax.experimental.pallas import tpu as pltpu


def _conv_seq_fused_kernel(x_ref, w_ref, b_ref, o_ref, *, seq_len, max_fs):
    # x_ref: (TB, S + 2*(max_fs//2), C*V)  compute dtype
    # w_ref: (max_fs*C*V, NF_pad)          compute dtype
    # b_ref: (1, NF_pad)                   f32
    # o_ref: (TB, S, NF_pad)               f32
    tb, _, cv = x_ref.shape
    nf_pad = w_ref.shape[-1]
    x = x_ref[...]
    # im2col-in-K: one matmul at K = max_fs*C*V instead of max_fs matmuls at
    # K = C*V -- fills the 128/256-deep MXU and issues a single vmatmul stream.
    xcat = jnp.concatenate(
        [x[:, k:k + seq_len, :] for k in range(max_fs)], axis=-1)
    xm = xcat.reshape(tb * seq_len, max_fs * cv)
    acc = jnp.dot(xm, w_ref[...], preferred_element_type=jnp.float32)
    acc = acc + b_ref[...].astype(jnp.float32)        # (1, NF_pad) broadcast
    o_ref[...] = acc.reshape(tb, seq_len, nf_pad).astype(o_ref.dtype)


def _pick_batch_tile(batch, seq_len, target_rows=256):
    """Largest divisor of `batch` keeping batch_tile*seq_len near target MXU rows."""
    cap = max(1, target_rows // max(seq_len, 1))
    best = 1
    for tb in range(1, batch + 1):
        if batch % tb == 0 and tb <= cap:
            best = tb
    # Prefer >=2 grid steps (v7x has two TensorCores) when that does not shrink
    # the matmul M dimension below a full 128-row MXU pass.
    if best == batch and batch > 1:
        for tb in range(best // 2, 0, -1):
            if batch % tb == 0 and tb * seq_len >= 128:
                return tb
    return best


def conv_seq_fused(x_pad, w_flat, b_flat, seq_len, max_fs, batch_tile):
    """x_pad: (B, S+2*(max_fs//2), C*V), w_flat: (max_fs*C*V, NF_pad),
    b_flat: (1, NF_pad)  ->  (B, S, NF_pad) float32."""
    B, s_pad, cv = x_pad.shape
    k_dim, nf_pad = w_flat.shape
    assert B % batch_tile == 0
    kern = functools.partial(_conv_seq_fused_kernel,
                             seq_len=seq_len, max_fs=max_fs)
    # Weight / bias index_maps are constant across the grid, so they are only
    # DMA'd once.  TODO(synk): at production (K, NF) sizes mark them
    # single-buffered (pipeline_mode=pl.Buffered(1)) or hoist into VMEM scratch
    # to reclaim the second buffer on v7x's 64 MiB VMEM.
    # TODO(synk): for very long sequences, tile the seq axis with a max_fs//2
    # halo instead of one full-sequence block per grid step.
    return pl.pallas_call(
        kern,
        out_shape=jax.ShapeDtypeStruct((B, seq_len, nf_pad), jnp.float32),
        grid=(B // batch_tile,),
        in_specs=[
            pl.BlockSpec((batch_tile, s_pad, cv), lambda i: (i, 0, 0)),
            pl.BlockSpec((k_dim, nf_pad), lambda i: (0, 0)),
            pl.BlockSpec((1, nf_pad), lambda i: (0, 0)),
        ],
        out_specs=pl.BlockSpec((batch_tile, seq_len, nf_pad),
                               lambda i: (i, 0, 0)),
        compiler_params=pltpu.CompilerParams(
            dimension_semantics=("parallel",),
            vmem_limit_bytes=32 * 1024 * 1024,
        ),
    )(x_pad, w_flat, b_flat)


class ConvSeqVecPallas:
    """JAX/Pallas port of fencr.modules.cnn.ConvSeqVec (deterministic init)."""

    def __init__(self, vector_size, filter_size, filter_num, in_channels=1,
                 key=None, compute_dtype=jnp.bfloat16):
        self.vector_size = vector_size
        self.filter_size = [filter_size] if isinstance(filter_size, int) else list(filter_size)
        self.filter_num = [filter_num] if isinstance(filter_num, int) else list(filter_num)
        assert len(self.filter_size) == len(self.filter_num)
        assert in_channels > 0
        self.in_channels = in_channels
        self.compute_dtype = compute_dtype

        # TODO(synk): even filter sizes change the output seq length (the
        # original torch.cat would also fail); only odd sizes are supported.
        for fs in self.filter_size:
            assert fs % 2 == 1, "even filter sizes change output seq length"

        key = jax.random.PRNGKey(0) if key is None else key
        C, V = in_channels, vector_size
        self.max_fs = max(self.filter_size)
        self.pad = self.max_fs // 2
        self.nf_total = sum(self.filter_num)
        # Lane-dense output: pad channel count up to a multiple of 128.
        self.nf_pad = ((self.nf_total + 127) // 128) * 128

        self.torch_weights = []   # original Conv2d layout (nf, C, fs, V), for reference
        self.torch_biases = []
        w_full = jnp.zeros((self.max_fs, C * V, self.nf_total), jnp.float32)
        b_full = jnp.zeros((self.nf_total,), jnp.float32)
        off = 0
        for i, fs in enumerate(self.filter_size):
            nf = self.filter_num[i]
            key, k_w, k_b = jax.random.split(key, 3)
            fan_in = C * fs * V
            bound = 1.0 / (fan_in ** 0.5)   # matches torch Conv2d default uniform bound
            w = jax.random.uniform(k_w, (nf, C, fs, V), jnp.float32, -bound, bound)
            b = jax.random.uniform(k_b, (nf,), jnp.float32, -bound, bound)
            self.torch_weights.append(w)
            self.torch_biases.append(b)
            # Repack (nf, C, fs, V) -> (fs, C*V, nf) and place this layer's taps
            # at offset (max_fs//2 - fs//2) in the shared-halo weight stack.
            w_k = jnp.transpose(w, (2, 1, 3, 0)).reshape(fs, C * V, nf)
            tap0 = self.pad - fs // 2
            w_full = w_full.at[tap0:tap0 + fs, :, off:off + nf].set(w_k)
            b_full = b_full.at[off:off + nf].set(b)
            off += nf

        # im2col-in-K weight: (max_fs*C*V, NF_pad), zero-padded output columns.
        w_flat = w_full.reshape(self.max_fs * C * V, self.nf_total)
        w_flat = jnp.pad(w_flat, ((0, 0), (0, self.nf_pad - self.nf_total)))
        self.w_flat = w_flat.astype(compute_dtype)
        self.b_flat = jnp.pad(b_full, (0, self.nf_pad - self.nf_total)).reshape(1, self.nf_pad)

    def __call__(self, x, pre_dims=1):
        in_shape = x.shape
        C, S, V = in_shape[-3], in_shape[-2], in_shape[-1]
        assert C == self.in_channels and V == self.vector_size
        x_flat = x.reshape((-1, C, S, V))
        B = x_flat.shape[0]
        if C == 1:
            x_bsv = x_flat.reshape(B, S, V)          # pure reshape, no HBM transpose
        else:
            x_bsv = jnp.transpose(x_flat, (0, 2, 1, 3)).reshape(B, S, C * V)
        x_bsv = x_bsv.astype(self.compute_dtype)
        # One shared halo pad for all filter sizes (pad = max(fs)//2).
        x_pad = jnp.pad(x_bsv, ((0, 0), (self.pad, self.pad), (0, 0)))
        tb = _pick_batch_tile(B, S)
        out = conv_seq_fused(x_pad, self.w_flat, self.b_flat, S, self.max_fs, tb)
        res = out[..., :self.nf_total]               # drop lane padding
        out_shape = tuple(in_shape[:pre_dims]) + (S, self.nf_total)
        return res.reshape(out_shape)

    def reference(self, x, pre_dims=1):
        """Pure-JAX (lax.conv) reference mirroring the PyTorch forward (f32)."""
        in_shape = x.shape
        C, S, V = in_shape[-3], in_shape[-2], in_shape[-1]
        x_flat = x.reshape((-1, C, S, V)).astype(jnp.float32)
        outs = []
        for fs, w, b in zip(self.filter_size, self.torch_weights, self.torch_biases):
            pad = fs // 2
            y = jax.lax.conv_general_dilated(
                x_flat, w, window_strides=(1, 1),
                padding=((pad, pad), (0, 0)),
                dimension_numbers=("NCHW", "OIHW", "NCHW"))    # (B, nf, S, 1)
            y = jnp.transpose(jnp.squeeze(y, axis=-1), (0, 2, 1)) + b  # (B, S, nf)
            outs.append(y)
        res = jnp.concatenate(outs, axis=-1)
        out_shape = tuple(in_shape[:pre_dims]) + (res.shape[-2], res.shape[-1])
        return res.reshape(out_shape)


if __name__ == "__main__":
    # Small shapes consistent with the module's forward: ? x C x seq x vector
    batch, in_channels, seq_len, vector_size = 2, 1, 16, 32
    filter_size = [3, 5]
    filter_num = [8, 16]

    key = jax.random.PRNGKey(0)
    k_x, k_params = jax.random.split(key)
    x = jax.random.normal(k_x, (batch, in_channels, seq_len, vector_size), jnp.float32)

    # f32 operand path: tight check against the lax.conv reference.
    mod_f32 = ConvSeqVecPallas(vector_size, filter_size, filter_num,
                               in_channels=in_channels, key=k_params,
                               compute_dtype=jnp.float32)
    out32 = jax.block_until_ready(mod_f32(x, pre_dims=1))
    assert out32.shape == (batch, seq_len, sum(filter_num)), out32.shape
    ref = jax.block_until_ready(mod_f32.reference(x, pre_dims=1))
    assert jnp.allclose(out32, ref, atol=1e-4, rtol=1e-4), \
        float(jnp.max(jnp.abs(out32 - ref)))

    # bf16 operand path (v6e/v7x MXU-native); accumulation is f32, so use a
    # relaxed tolerance for the operand-rounding error.
    mod_bf16 = ConvSeqVecPallas(vector_size, filter_size, filter_num,
                                in_channels=in_channels, key=k_params,
                                compute_dtype=jnp.bfloat16)
    out16 = jax.block_until_ready(mod_bf16(x, pre_dims=1))
    assert out16.shape == (batch, seq_len, sum(filter_num)), out16.shape
    assert jnp.allclose(out16, ref, atol=3e-2, rtol=3e-2), \
        float(jnp.max(jnp.abs(out16 - ref)))

    print("KERNEL_OK")
</pallas_src>

<mosaic_0001>
module attributes {stable_mosaic.version = 11 : i64} {
  func.func @_conv_seq_fused_kernel(%arg0: i32, %arg1: memref<2x20x32xf32, #tpu.memory_space<vmem>>, %arg2: memref<160x128xf32, #tpu.memory_space<vmem>>, %arg3: memref<1x128xf32, #tpu.memory_space<vmem>>, %arg4: memref<2x16x128xf32, #tpu.memory_space<vmem>>) attributes {dimension_semantics = [#tpu.dimension_semantics<parallel>], iteration_bounds = array<i64: 1>, scalar_prefetch = 0 : i64, scratch_operands = 0 : i64, tpu.core_type = #tpu.core_type<tc>, window_params = [{transform_indices = @transform_0, window_bounds = array<i64: 2, 20, 32>}, {pipeline_mode = #tpu.pipeline_mode<synchronous>, transform_indices = @transform_1, window_bounds = array<i64: 160, 128>}, {pipeline_mode = #tpu.pipeline_mode<synchronous>, transform_indices = @transform_2, window_bounds = array<i64: 1, 128>}, {transform_indices = @transform_3, window_bounds = array<i64: 2, 16, 128>}]} {
    %c0 = arith.constant 0 : index
    %c0_0 = arith.constant 0 : index
    %c0_1 = arith.constant 0 : index
    %0 = vector.load %arg1[%c0, %c0_0, %c0_1] : memref<2x20x32xf32, #tpu.memory_space<vmem>>, vector<2x20x32xf32>
    %1 = vector.extract_strided_slice %0 {offsets = [0, 0, 0], sizes = [2, 16, 32], strides = [1, 1, 1]} : vector<2x20x32xf32> to vector<2x16x32xf32>
    %2 = vector.extract_strided_slice %0 {offsets = [0, 1, 0], sizes = [2, 16, 32], strides = [1, 1, 1]} : vector<2x20x32xf32> to vector<2x16x32xf32>
    %3 = vector.extract_strided_slice %0 {offsets = [0, 2, 0], sizes = [2, 16, 32], strides = [1, 1, 1]} : vector<2x20x32xf32> to vector<2x16x32xf32>
    %4 = vector.extract_strided_slice %0 {offsets = [0, 3, 0], sizes = [2, 16, 32], strides = [1, 1, 1]} : vector<2x20x32xf32> to vector<2x16x32xf32>
    %5 = vector.extract_strided_slice %0 {offsets = [0, 4, 0], sizes = [2, 16, 32], strides = [1, 1, 1]} : vector<2x20x32xf32> to vector<2x16x32xf32>
    %6 = tpu.concatenate %1, %2, %3, %4, %5 in 2 : vector<2x16x32xf32>, vector<2x16x32xf32>, vector<2x16x32xf32>, vector<2x16x32xf32>, vector<2x16x32xf32> -> vector<2x16x160xf32>
    %7 = vector.shape_cast %6 : vector<2x16x160xf32> to vector<32x160xf32>
    %c0_2 = arith.constant 0 : index
    %c0_3 = arith.constant 0 : index
    %8 = vector.load %arg2[%c0_2, %c0_3] : memref<160x128xf32, #tpu.memory_space<vmem>>, vector<160x128xf32>
    %cst = arith.constant dense<0.000000e+00> : vector<32x128xf32>
    %9 = tpu.matmul %7, %8, %cst {dimension_numbers = #tpu.dot_dimension_numbers<[1], [0], [0], [1], [0, 0, 1, 1], [], []>} : vector<32x160xf32>, vector<160x128xf32>, vector<32x128xf32> -> vector<32x128xf32>
    %c0_4 = arith.constant 0 : index
    %c0_5 = arith.constant 0 : index
    %10 = vector.load %arg3[%c0_4, %c0_5] : memref<1x128xf32, #tpu.memory_space<vmem>>, vector<1x128xf32>
    %11 = vector.broadcast %10 : vector<1x128xf32> to vector<32x128xf32>
    %12 = arith.addf %9, %11 : vector<32x128xf32>
    %13 = vector.shape_cast %12 : vector<32x128xf32> to vector<2x16x128xf32>
    %c0_6 = arith.constant 0 : index
    %c0_7 = arith.constant 0 : index
    %c0_8 = arith.constant 0 : index
    %14 = vector.load %arg4[%c0_6, %c0_7, %c0_8] : memref<2x16x128xf32, #tpu.memory_space<vmem>>, vector<2x16x128xf32>
    tpu.vector_store %arg4[%c0_6, %c0_7, %c0_8], %13 {strides = array<i32>} : memref<2x16x128xf32, #tpu.memory_space<vmem>>, vector<2x16x128xf32>,
    return
  }
  func.func @transform_0(%arg0: i32) -> (i32, i32, i32) {
    %c0_i32 = arith.constant 0 : i32
    %c0_i32_0 = arith.constant 0 : i32
    %c0_i32_1 = arith.constant 0 : i32
    return %arg0, %c0_i32, %c0_i32_0 : i32, i32, i32
  }
  func.func @transform_1(%arg0: i32) -> (i32, i32) {
    %c0_i32 = arith.constant 0 : i32
    %c0_i32_0 = arith.constant 0 : i32
    %c0_i32_1 = arith.constant 0 : i32
    return %c0_i32, %c0_i32_0 : i32, i32
  }
  func.func @transform_2(%arg0: i32) -> (i32, i32) {
    %c0_i32 = arith.constant 0 : i32
    %c0_i32_0 = arith.constant 0 : i32
    %c0_i32_1 = arith.constant 0 : i32
    return %c0_i32, %c0_i32_0 : i32, i32
  }
  func.func @transform_3(%arg0: i32) -> (i32, i32, i32) {
    %c0_i32 = arith.constant 0 : i32
    %c0_i32_0 = arith.constant 0 : i32
    %c0_i32_1 = arith.constant 0 : i32
    return %arg0, %c0_i32, %c0_i32_0 : i32, i32, i32
  }
}

</mosaic_0001>

<llo_original>
// kernel: tpu_custom_call.1
$region0: #{tpu_custom_call.1}
  #allocation0 [shape = 'u32[]', space=smem, size = 0x4, offset = 0x4, fixed_abs, tag = 'smem constant byte address 0x4 - core index']
  #allocation1 [shape = 'u32[72,128]{1,0:T(1,128)}', space=vmem, size = 0x9000, scoped, tag = 'internal scratch']
  %s0 = inlined_call_operand.vmem [shape: f32[2,20,32], index: 0, kind: input, shape index: {}]
  %s1 = inlined_call_operand.hbm [shape: f32[160,128], index: 1, kind: input, shape index: {}]
  %s2 = inlined_call_operand.vmem [shape: f32[1,128], index: 2, kind: input, shape index: {}]
  %s3 = inlined_call_operand.hbm [shape: f32[2,16,128], index: 3, kind: output, shape index: {}]
  %s4 = sld [smem:[#allocation0]]
  $region26: #{tpu_custom_call.1} parent=0
    _
  %s6 = ssub.s32 1, %s4
  %s7 = scalar_select 0, %s6, %s4
  $region1: #{tpu_custom_call.1} parent=0
    #allocation2 [shape = 'u8[81920]{0}', space=vmem, size = 0x14000, scoped, tag = 'input window, operand 1, single buffered']
    #allocation3 [shape = 's32[1]{0}', space=sflag, size = 0x4, scoped, tag = 'scoped memory for tpu_custom_call.1']
    #allocation4 [shape = 's32[1]{0}', space=sflag, size = 0x4, scoped, tag = 'scoped memory for tpu_custom_call.1']
    #allocation5 [shape = 'u8[16384]{0}', space=vmem, size = 0x4000, scoped, tag = 'output window, operand 0, single buffered']
    %8 = vsyncpa [#allocation3], 0
    %9 = vsyncpa [#allocation4], 0
    // Predicated region
    $region2: #{tpu_custom_call.1} parent=1 // pred_check
      _
    $region3: #{tpu_custom_call.1} parent=1 // pred_check_branch
      %11 = sbr.rel (0) target = $region5
    $region4: #{tpu_custom_call.1} parent=1 // pred_region
      _
    $region5: #{tpu_custom_call.1} parent=1 // pred_fallthru
      _
    // Predicated region
    $region6: #{tpu_custom_call.1} parent=1 // pred_check
      _
    $region7: #{tpu_custom_call.1} parent=1 // pred_check_branch
      %13 = sbr.rel (0) target = $region9
    $region8: #{tpu_custom_call.1} parent=1 // pred_region
      %15 = vsyncadd [#allocation3], 0
      %s16 = sshll.u32 %s1, 4
      %s17 = int_to_ptr.hbm [resolvable:$true] %s16
      %s18 = sshll.u32 [#allocation2], 4
      %s19 = int_to_ptr.vmem [resolvable:$true] %s18
      %24 = dma.hbm_to_vmem [thread:$0]  %s17, 2560, %s19, [#allocation3], 128, 128, 8
    $region9: #{tpu_custom_call.1} parent=1 // pred_fallthru
      _
    // Predicated region
    $region10: #{tpu_custom_call.1} parent=1 // pred_check
      _
    $region11: #{tpu_custom_call.1} parent=1 // pred_check_branch
      %26 = sbr.rel (0) target = $region13
    $region12: #{tpu_custom_call.1} parent=1 // pred_region
      _
    $region13: #{tpu_custom_call.1} parent=1 // pred_fallthru
      _
    // Predicated region
    $region14: #{tpu_custom_call.1} parent=1 // pred_check
      _
    $region15: #{tpu_custom_call.1} parent=1 // pred_check_branch
      %28 = sbr.rel (0) target = $region17
    $region16: #{tpu_custom_call.1} parent=1 // pred_region
      %30 = dma.done [#allocation3], 2560
    $region17: #{tpu_custom_call.1} parent=1 // pred_fallthru
      _
    %v31 = vld [vmem:[%s0] sm:$0xff]
    %v32 = vld [vmem:[%s0 + $0x8] sm:$0xff]
    %v33 = vld [vmem:[%s0 + $0x10] sm:$0xf]
    %v34 = vld [vmem:[%s0 + $0x18] sm:$0xff]
    %v35 = vld [vmem:[%s0 + $0x20] sm:$0xff]
    %v36 = vld [vmem:[%s0 + $0x28] sm:$0xf]
    %vm43 = vcmask 1046528
    %v44 = vrot.slane %v31, 1
    %v45 = vrot.slane %v32, 1
    %v46 = vsel %vm43, %v44, %v45
    %v47 = vrot.slane %v33, 1
    %v48 = vsel %vm43, %v45, %v47
    %v49 = vrot.slane %v34, 1
    %v50 = vrot.slane %v35, 1
    %v51 = vsel %vm43, %v49, %v50
    %v52 = vrot.slane %v36, 1
    %v53 = vsel %vm43, %v50, %v52
    %54 = vrot.lane.b32.xlu0 %v46, 32
    %v55 = vpop.permute.xlu0 %54
    %56 = vrot.lane.b32.xlu0 %v48, 32
    %v57 = vpop.permute.xlu0 %56
    %58 = vrot.lane.b32.xlu0 %v51, 32
    %v59 = vpop.permute.xlu0 %58
    %60 = vrot.lane.b32.xlu0 %v53, 32
    %v61 = vpop.permute.xlu0 %60
    %vm66 = vcmask 1045504
    %v67 = vrot.slane %v31, 2
    %v68 = vrot.slane %v32, 2
    %v69 = vsel %vm66, %v67, %v68
    %v70 = vrot.slane %v33, 2
    %v71 = vsel %vm66, %v68, %v70
    %v72 = vrot.slane %v34, 2
    %v73 = vrot.slane %v35, 2
    %v74 = vsel %vm66, %v72, %v73
    %v75 = vrot.slane %v36, 2
    %v76 = vsel %vm66, %v73, %v75
    %77 = vrot.lane.b32.xlu0 %v69, 64
    %v78 = vpop.permute.xlu0 %77
    %79 = vrot.lane.b32.xlu0 %v71, 64
    %v80 = vpop.permute.xlu0 %79
    %81 = vrot.lane.b32.xlu0 %v74, 64
    %v82 = vpop.permute.xlu0 %81
    %83 = vrot.lane.b32.xlu0 %v76, 64
    %v84 = vpop.permute.xlu0 %83
    %vm89 = vcmask 1044480
    %v90 = vrot.slane %v31, 3
    %v91 = vrot.slane %v32, 3
    %v92 = vsel %vm89, %v90, %v91
    %v93 = vrot.slane %v33, 3
    %v94 = vsel %vm89, %v91, %v93
    %v95 = vrot.slane %v34, 3
    %v96 = vrot.slane %v35, 3
    %v97 = vsel %vm89, %v95, %v96
    %v98 = vrot.slane %v36, 3
    %v99 = vsel %vm89, %v96, %v98
    %100 = vrot.lane.b32.xlu0 %v92, 96
    %v101 = vpop.permute.xlu0 %100
    %102 = vrot.lane.b32.xlu0 %v94, 96
    %v103 = vpop.permute.xlu0 %102
    %104 = vrot.lane.b32.xlu0 %v97, 96
    %v105 = vpop.permute.xlu0 %104
    %106 = vrot.lane.b32.xlu0 %v99, 96
    %v107 = vpop.permute.xlu0 %106
    %vm112 = vcmask 1043456
    %v113 = vrot.slane %v31, 4
    %v114 = vrot.slane %v32, 4
    %v115 = vsel %vm112, %v113, %v114
    %v116 = vrot.slane %v33, 4
    %v117 = vsel %vm112, %v114, %v116
    %v118 = vrot.slane %v34, 4
    %v119 = vrot.slane %v35, 4
    %v120 = vsel %vm112, %v118, %v119
    %v121 = vrot.slane %v36, 4
    %v122 = vsel %vm112, %v119, %v121
    %vm123 = vcmask 261120
    %v124 = vsel %vm123, %v31, %v55
    %v125 = vsel %vm123, %v32, %v57
    %v126 = vsel %vm123, %v34, %v59
    %v127 = vsel %vm123, %v35, %v61
    %vm128 = vcmask 523264
    %v129 = vsel %vm128, %v124, %v78
    %v130 = vsel %vm128, %v125, %v80
    %v131 = vsel %vm128, %v126, %v82
    %v132 = vsel %vm128, %v127, %v84
    %vm133 = vcmask 785408
    %v134 = vsel %vm133, %v129, %v101
    %v135 = vsel %vm133, %v130, %v103
    %v136 = vsel %vm133, %v131, %v105
    %v137 = vsel %vm133, %v132, %v107
    %v138 = vld [vmem:[#allocation2] sm:$0xff]
    %v139 = vld [vmem:[#allocation2 + $0x8] sm:$0xff]
    %v140 = vld [vmem:[#allocation2 + $0x10] sm:$0xff]
    %v141 = vld [vmem:[#allocation2 + $0x18] sm:$0xff]
    %v142 = vld [vmem:[#allocation2 + $0x20] sm:$0xff]
    %v143 = vld [vmem:[#allocation2 + $0x28] sm:$0xff]
    %v144 = vld [vmem:[#allocation2 + $0x30] sm:$0xff]
    %v145 = vld [vmem:[#allocation2 + $0x38] sm:$0xff]
    %v146 = vld [vmem:[#allocation2 + $0x40] sm:$0xff]
    %v147 = vld [vmem:[#allocation2 + $0x48] sm:$0xff]
    %v148 = vld [vmem:[#allocation2 + $0x50] sm:$0xff]
    %v149 = vld [vmem:[#allocation2 + $0x58] sm:$0xff]
    %v150 = vld [vmem:[#allocation2 + $0x60] sm:$0xff]
    %v151 = vld [vmem:[#allocation2 + $0x68] sm:$0xff]
    %v152 = vld [vmem:[#allocation2 + $0x70] sm:$0xff]
    %v153 = vld [vmem:[#allocation2 + $0x78] sm:$0xff]
    %v154 = vld [vmem:[#allocation2 + $0x80] sm:$0xff]
    %v155 = vld [vmem:[#allocation2 + $0x88] sm:$0xff]
    %v156 = vld [vmem:[#allocation2 + $0x90] sm:$0xff]
    %v157 = vld [vmem:[#allocation2 + $0x98] sm:$0xff]
    %v158 = vld [vmem:[%s2] sm:$0x1]
    %v160 = vperm.slane %v158, 0
    %v162 = vsel %vm123, %v115, 0
    %v164 = vsel %vm123, %v117, 0
    %v166 = vsel %vm123, %v120, 0
    %v168 = vsel %vm123, %v122, 0
    %170 = vmatpush.msra.mxu0 %v153
    %171 = vmatpush.msra.mxu0 %v152
    %172 = vmatpush.msra.mxu0 %v151
    %173 = vmatpush.msra.mxu0 %v150
    %174 = vmatpush.msra.mxu0 %v149
    %175 = vmatpush.msra.mxu0 %v148
    %176 = vmatpush.msra.mxu0 %v147
    %177 = vmatpush.msra.mxu0 %v146
    %178 = vmatpush.msra.mxu0 %v145
    %179 = vmatpush.msra.mxu0 %v144
    %180 = vmatpush.msra.mxu0 %v143
    %181 = vmatpush.msra.mxu0 %v142
    %182 = vmatpush.msra.mxu0 %v141
    %183 = vmatpush.msra.mxu0 %v140
    %184 = vmatpush.msra.mxu0 %v139
    %185 = vmatpush.msra.mxu0 %v138
    %186 = vmatmul.f32.gmra.mxu0 %v134
    %v187 = vpop.f32.mrf.mxu0
    %v188 = vadd.f32 %v160, %v187
    %189 = vmatmul.f32.gmra.mxu0 %v135
    %v190 = vpop.f32.mrf.mxu0
    %v191 = vadd.f32 %v160, %v190
    %192 = vmatmul.f32.gmra.mxu0 %v136
    %v193 = vpop.f32.mrf.mxu0
    %v194 = vadd.f32 %v160, %v193
    %195 = vmatmul.f32.gmra.mxu0 %v137
    %v196 = vpop.f32.mrf.mxu0
    %v197 = vadd.f32 %v160, %v196
    %198 = vdwg.mxu0
    %199 = vmatpush.msra.mxu0 0.0
    %200 = vmatpush.msra.mxu0 0.0
    %201 = vmatpush.msra.mxu0 0.0
    %202 = vmatpush.msra.mxu0 0.0
    %203 = vmatpush.msra.mxu0 0.0
    %204 = vmatpush.msra.mxu0 0.0
    %205 = vmatpush.msra.mxu0 0.0
    %206 = vmatpush.msra.mxu0 0.0
    %207 = vmatpush.msra.mxu0 0.0
    %208 = vmatpush.msra.mxu0 0.0
    %209 = vmatpush.msra.mxu0 0.0
    %210 = vmatpush.msra.mxu0 0.0
    %211 = vmatpush.msra.mxu0 %v157
    %212 = vmatpush.msra.mxu0 %v156
    %213 = vmatpush.msra.mxu0 %v155
    %214 = vmatpush.msra.mxu0 %v154
    %215 = vmatmul.f32.gmra.mxu0 %v162
    %v216 = vpop.f32.mrf.mxu0
    %v217 = vadd.f32 %v188, %v216
    %218 = vmatmul.f32.gmra.mxu0 %v164
    %v219 = vpop.f32.mrf.mxu0
    %v220 = vadd.f32 %v191, %v219
    %221 = vmatmul.f32.gmra.mxu0 %v166
    %v222 = vpop.f32.mrf.mxu0
    %v223 = vadd.f32 %v194, %v222
    %224 = vmatmul.f32.gmra.mxu0 %v168
    %v225 = vpop.f32.mrf.mxu0
    %v226 = vadd.f32 %v197, %v225
    %227 = vdwg.mxu0
    %228 = vst [vmem:[#allocation5] sm:$0xff] %v217
    %229 = vst [vmem:[#allocation5 + $0x8] sm:$0xff] %v220
    %230 = vst [vmem:[#allocation5 + $0x10] sm:$0xff] %v223
    %231 = vst [vmem:[#allocation5 + $0x18] sm:$0xff] %v226
    // Predicated region
    $region18: #{tpu_custom_call.1} parent=1 // pred_check
      _
    $region19: #{tpu_custom_call.1} parent=1 // pred_check_branch
      %233 = sbr.rel (0) target = $region21
    $region20: #{tpu_custom_call.1} parent=1 // pred_region
      %235 = vsyncadd [#allocation4], 0
      %s236 = sshll.u32 [#allocation5], 4
      %s237 = int_to_ptr.vmem [resolvable:$true] %s236
      %s238 = sshll.u32 %s3, 4
      %s239 = int_to_ptr.hbm [resolvable:$true] %s238
      %244 = dma.vmem_to_hbm [thread:$0]  %s237, 512, %s239, [#allocation4], 128, 128, 8
    $region21: #{tpu_custom_call.1} parent=1 // pred_fallthru
      _
    // Predicated region
    $region22: #{tpu_custom_call.1} parent=1 // pred_check
      _
    $region23: #{tpu_custom_call.1} parent=1 // pred_check_branch
      %246 = sbr.rel (0) target = $region25
    $region24: #{tpu_custom_call.1} parent=1 // pred_region
      %248 = dma.done [#allocation4], 512
    $region25: #{tpu_custom_call.1} parent=1 // pred_fallthru
      _
    %249 = vsyncpa [#allocation3], 1
    %250 = vsyncpa [#allocation4], 1

</llo_original>
